<compile_context>
chip_gen: v6e
topology: v6e:2x2x1
jax: 0.10.0
libtpu: 0.0.40
codegen_flags: <defaults>
</compile_context>

<pallas_src>
import functools

import jax
import jax.numpy as jnp
import numpy as np
from jax.experimental import pallas as pl
from jax.experimental.pallas import tpu as pltpu


def _round_up(x, m):
    return (x + m - 1) // m * m


def attention_kernel(hid_ref, enc_ref, wh_ref, we_ref, b_ref, v_ref, out_ref,
                     *, s_valid, matmul_dtype, need_mask):
    """Grid = (batch tile i ["parallel"], S chunk j ["arbitrary"]).

    hid_ref : (tb, H)       last-layer decoder hidden        (input dtype)
    enc_ref : (tb, ts, 2H)  encoder-output chunk             (input dtype)
    wh_ref  : (H, H)        attn-weight slice acting on `hidden`
    we_ref  : (2H, H)       attn-weight slice acting on `encoder_outputs`
    b_ref   : (1, H)        attn bias                        (f32)
    v_ref   : (1, H)        score vector, lane-major         (f32)
    out_ref : (tb, S_pad)   resident across j; raw scores until the last chunk,
                            then the softmax'd attention weights (f32)
    """
    tb, ts, two_h = enc_ref.shape
    h_dim = wh_ref.shape[1]
    j = pl.program_id(1)

    # hidden @ W_h + bias (bias folded here: a (tb,H) add instead of (tb,ts,H)).
    # Recomputed per S chunk: cost ~ tb*H^2, negligible vs tb*ts*2H*H below.
    hb = jnp.dot(hid_ref[...].astype(matmul_dtype), wh_ref[...],
                 preferred_element_type=jnp.float32) + b_ref[...]       # (tb, H)

    # Encoder-chunk projection as ONE large-M MXU matmul.  ts is a multiple of
    # 128, so the (tb,ts,2H) <-> (tb*ts,2H) reshapes are layout no-ops.
    enc = enc_ref[...].astype(matmul_dtype)                             # in-VMEM cast
    eproj = jnp.dot(enc.reshape(tb * ts, two_h), we_ref[...],
                    preferred_element_type=jnp.float32)
    eproj = eproj.reshape(tb, ts, h_dim)

    energy = jnp.tanh(eproj + hb[:, None, :])                           # f32

    # Score projection (output width 1): VPU multiply + lane reduce instead of
    # a degenerate N=1 MXU matmul.
    scores = jnp.sum(energy * v_ref[...][None, :, :], axis=-1)          # (tb, ts)

    if need_mask:
        # Padded / ragged source positions read undefined data -> mask them so
        # softmax over S_pad == softmax over S.  Must happen before max/exp.
        col = j * ts + jax.lax.broadcasted_iota(jnp.int32, (tb, ts), 1)
        scores = jnp.where(col < s_valid, scores, jnp.float32(-1e30))

    off = pl.multiple_of(j * ts, 128)                 # lane-aligned chunk store
    out_ref[:, pl.ds(off, ts)] = scores

    # Softmax over the full (VMEM-resident) score row, once per batch tile.
    @pl.when(j == pl.num_programs(1) - 1)
    def _():
        s = out_ref[...]
        m = jnp.max(s, axis=1, keepdims=True)
        e = jnp.exp(s - m)
        denom = jnp.sum(e, axis=1, keepdims=True)
        out_ref[...] = e * pl.reciprocal(denom, approx=True)


def _choose_tiles(B, S, two_h, h_dim, enc_itemsize, md_itemsize):
    """Generation-aware, VMEM-budgeted (tb, ts) selection."""
    try:
        vmem_cap = int(pltpu.get_tpu_info().vmem_capacity_bytes)
    except Exception:
        vmem_cap = 64 << 20                                # v7x-safe fallback
    # ~96 MiB on v5e/v6e (128 MiB VMEM), ~48 MiB on v7x (64 MiB VMEM).
    vmem_limit = min(vmem_cap * 3 // 4, 100 << 20)
    budget = int(vmem_limit * 0.85)

    def s_tiles(ts):
        ns = -(-S // ts)
        return ns, ns * ts

    def vmem_per_step(tb, ts, s_pad):
        enc_in = 2 * tb * ts * two_h * enc_itemsize        # double-buffered enc chunk
        enc_cast = tb * ts * two_h * md_itemsize           # in-kernel cast copy
        out_res = 2 * tb * s_pad * 4                       # resident output row
        temps = 2 * tb * ts * h_dim * 4                    # eproj + energy (f32)
        weights = 2 * (h_dim * h_dim + two_h * h_dim) * md_itemsize
        small = 4 * tb * max(h_dim, 128) * 4 + 8 * max(h_dim, 128) * 4
        return enc_in + enc_cast + out_res + temps + weights + small

    # Batch tile: multiple of 8 (sublane), <= B, capped so the "parallel"
    # batch axis keeps >= 2 steps (megacore sharding on v7x).
    if B <= 8:
        tb = B                                             # full batch, single block
    else:
        tb = min(256, (B // 8) * 8)
        tb = min(tb, max(8, _round_up(-(-B // 2), 8)))

    # S chunk: lane-dense multiple of 128.
    ts = min(512, _round_up(S, 128))
    ns, s_pad = s_tiles(ts)

    while tb > 8 and vmem_per_step(tb, ts, s_pad) > budget:
        tb -= 8
    while ts > 128 and vmem_per_step(tb, ts, s_pad) > budget:
        ts -= 128
        ns, s_pad = s_tiles(ts)

    return tb, ts, ns, s_pad, int(vmem_limit)


def prepare_params(params, matmul_dtype=jnp.bfloat16):
    """One-time split/transpose of the PyTorch-layout weights.

    PyTorch Linear weight is (out, in) = (H, 3H): y = x @ W.T + b.  The concat
    along the feature dim splits exactly into W.T[:H] (hidden) + W.T[H:] (enc).
    Done once, outside the per-decode-step path.
    """
    w_attn, b_attn, v_w = params["w_attn"], params["b_attn"], params["v"]
    H = b_attn.shape[0]
    wt = w_attn.T                                          # (3H, H)
    return {
        "wh": wt[:H, :].astype(matmul_dtype),              # (H, H)
        "we": wt[H:, :].astype(matmul_dtype),              # (2H, H)
        "b": b_attn.reshape(1, H).astype(jnp.float32),     # (1, H)
        "v": v_w.reshape(1, H).astype(jnp.float32),        # (1, H)  lane-major
    }


def attention_forward(hidden, encoder_outputs, prepared):
    """hidden: (L, B, H); encoder_outputs: (B, S, 2H). Returns (B, S) f32."""
    h_last = hidden[-1]                                    # (B, H) — tiny slice
    B, H = h_last.shape
    _, S, twoH = encoder_outputs.shape
    matmul_dtype = prepared["wh"].dtype

    enc_isz = jnp.dtype(encoder_outputs.dtype).itemsize
    md_isz = jnp.dtype(matmul_dtype).itemsize
    tb, ts, ns, S_pad, vmem_limit = _choose_tiles(B, S, twoH, H, enc_isz, md_isz)
    nb = pl.cdiv(B, tb)

    kernel = functools.partial(attention_kernel, s_valid=S,
                               matmul_dtype=matmul_dtype,
                               need_mask=(S != S_pad))

    flops = (2 * B * H * H * ns                   # hidden projection (per chunk)
             + 2 * B * S_pad * twoH * H           # encoder projection
             + 2 * B * S_pad * H)                 # score reduce
    transcendentals = B * S_pad * H + B * S_pad   # tanh + exp
    bytes_accessed = (B * H * jnp.dtype(h_last.dtype).itemsize * ns
                      + B * S * twoH * enc_isz
                      + (H * H + twoH * H) * md_isz * ns
                      + 2 * H * 4                                 # bias + v (f32)
                      + B * S_pad * 4)                            # output (f32)

    out = pl.pallas_call(
        kernel,
        out_shape=jax.ShapeDtypeStruct((B, S_pad), jnp.float32),
        grid=(nb, ns),
        in_specs=[
            pl.BlockSpec((tb, H), lambda i, j: (i, 0)),             # hidden
            pl.BlockSpec((tb, ts, twoH), lambda i, j: (i, j, 0)),   # encoder chunk
            pl.BlockSpec((H, H), lambda i, j: (0, 0)),              # W_h
            pl.BlockSpec((twoH, H), lambda i, j: (0, 0)),           # W_e
            pl.BlockSpec((1, H), lambda i, j: (0, 0)),              # bias
            pl.BlockSpec((1, H), lambda i, j: (0, 0)),              # v
        ],
        out_specs=pl.BlockSpec((tb, S_pad), lambda i, j: (i, 0)),   # resident over j
        compiler_params=pltpu.CompilerParams(
            dimension_semantics=("parallel", "arbitrary"),
            vmem_limit_bytes=vmem_limit),
        cost_estimate=pl.CostEstimate(
            flops=int(flops), transcendentals=int(transcendentals),
            bytes_accessed=int(bytes_accessed)),
    )(h_last, encoder_outputs, prepared["wh"], prepared["we"],
      prepared["b"], prepared["v"])

    return out[:, :S]


def init_params(key, hid_dim):
    """Deterministic init mimicking nn.Linear defaults (U(-1/sqrt(fan_in), ..))."""
    k1, k2, k3 = jax.random.split(key, 3)
    bound_a = 1.0 / np.sqrt(3 * hid_dim)
    bound_v = 1.0 / np.sqrt(hid_dim)
    return {
        "w_attn": jax.random.uniform(k1, (hid_dim, 3 * hid_dim),
                                     jnp.float32, -bound_a, bound_a),
        "b_attn": jax.random.uniform(k2, (hid_dim,),
                                     jnp.float32, -bound_a, bound_a),
        "v": jax.random.uniform(k3, (1, hid_dim),
                                jnp.float32, -bound_v, bound_v),
    }


def reference_forward(hidden, encoder_outputs, params):
    """Pure-JAX mirror of the PyTorch forward (f32, highest matmul precision)."""
    S = encoder_outputs.shape[1]
    h = jnp.repeat(hidden[-1][:, None, :], S, axis=1)          # (B, S, H)
    x = jnp.concatenate([h, encoder_outputs], axis=2)          # (B, S, 3H)
    with jax.default_matmul_precision("highest"):
        energy = jnp.tanh(x @ params["w_attn"].T + params["b_attn"])
        attn = (energy @ params["v"].T)[..., 0]                # (B, S)
    return jax.nn.softmax(attn, axis=1)


if __name__ == "__main__":
    HID = 32      # hid_dim
    B = 2         # batch
    S = 8         # src_len
    L = 2         # rnn layers

    key = jax.random.PRNGKey(0)
    kp, kh, ke = jax.random.split(key, 3)

    params = init_params(kp, HID)
    hidden = jax.random.normal(kh, (L, B, HID), jnp.float32)
    encoder_outputs = jax.random.normal(ke, (B, S, 2 * HID), jnp.float32)

    ref = reference_forward(hidden, encoder_outputs, params)

    # f32 matmul path: tight numerical check.
    prep32 = prepare_params(params, matmul_dtype=jnp.float32)
    out32 = jax.block_until_ready(attention_forward(hidden, encoder_outputs, prep32))
    assert out32.shape == (B, S)
    np.testing.assert_allclose(np.asarray(out32), np.asarray(ref),
                               rtol=5e-3, atol=1e-4)
    np.testing.assert_allclose(np.asarray(out32).sum(axis=1),
                               np.ones(B, np.float32), rtol=0, atol=5e-3)

    # bf16 matmul path (default perf config): looser check, f32 accumulation.
    prep16 = prepare_params(params, matmul_dtype=jnp.bfloat16)
    out16 = jax.block_until_ready(attention_forward(hidden, encoder_outputs, prep16))
    np.testing.assert_allclose(np.asarray(out16), np.asarray(ref),
                               rtol=5e-2, atol=3e-2)

    # Multi-batch-tile grid + ragged-S masking (S not a multiple of 128).
    B2, S2 = 16, 200
    kh2, ke2 = jax.random.split(jax.random.PRNGKey(1), 2)
    hidden2 = jax.random.normal(kh2, (L, B2, HID), jnp.float32)
    enc2 = jax.random.normal(ke2, (B2, S2, 2 * HID), jnp.float32)
    ref2 = reference_forward(hidden2, enc2, params)
    out2 = jax.block_until_ready(attention_forward(hidden2, enc2, prep32))
    np.testing.assert_allclose(np.asarray(out2), np.asarray(ref2),
                               rtol=5e-3, atol=1e-4)

    # Multi-S-chunk path (ns > 1): streamed encoder chunks, resident-score softmax.
    B3, S3 = 16, 700
    kh3, ke3 = jax.random.split(jax.random.PRNGKey(2), 2)
    hidden3 = jax.random.normal(kh3, (L, B3, HID), jnp.float32)
    enc3 = jax.random.normal(ke3, (B3, S3, 2 * HID), jnp.float32)
    ref3 = reference_forward(hidden3, enc3, params)
    out3 = jax.block_until_ready(attention_forward(hidden3, enc3, prep32))
    np.testing.assert_allclose(np.asarray(out3), np.asarray(ref3),
                               rtol=5e-3, atol=1e-4)

    print("KERNEL_OK")
</pallas_src>

<mosaic_0001>
module attributes {stable_mosaic.version = 11 : i64} {
  func.func @attention_kernel(%arg0: i32, %arg1: i32, %arg2: memref<2x32xf32, #tpu.memory_space<vmem>>, %arg3: memref<2x128x64xf32, #tpu.memory_space<vmem>>, %arg4: memref<32x32xf32, #tpu.memory_space<vmem>>, %arg5: memref<64x32xf32, #tpu.memory_space<vmem>>, %arg6: memref<1x32xf32, #tpu.memory_space<vmem>>, %arg7: memref<1x32xf32, #tpu.memory_space<vmem>>, %arg8: memref<2x128xf32, #tpu.memory_space<vmem>>) attributes {dimension_semantics = [#tpu.dimension_semantics<parallel>, #tpu.dimension_semantics<arbitrary>], iteration_bounds = array<i64: 1, 1>, scalar_prefetch = 0 : i64, scratch_operands = 0 : i64, tpu.core_type = #tpu.core_type<tc>, window_params = [{transform_indices = @transform_0, window_bounds = array<i64: 2, 32>}, {transform_indices = @transform_1, window_bounds = array<i64: 2, 128, 64>}, {pipeline_mode = #tpu.pipeline_mode<synchronous>, transform_indices = @transform_2, window_bounds = array<i64: 32, 32>}, {pipeline_mode = #tpu.pipeline_mode<synchronous>, transform_indices = @transform_3, window_bounds = array<i64: 64, 32>}, {pipeline_mode = #tpu.pipeline_mode<synchronous>, transform_indices = @transform_4, window_bounds = array<i64: 1, 32>}, {pipeline_mode = #tpu.pipeline_mode<synchronous>, transform_indices = @transform_5, window_bounds = array<i64: 1, 32>}, {transform_indices = @transform_6, window_bounds = array<i64: 2, 128>}]} {
    %c0 = arith.constant 0 : index
    %c0_0 = arith.constant 0 : index
    %0 = vector.load %arg2[%c0, %c0_0] : memref<2x32xf32, #tpu.memory_space<vmem>>, vector<2x32xf32>
    %c0_1 = arith.constant 0 : index
    %c0_2 = arith.constant 0 : index
    %1 = vector.load %arg4[%c0_1, %c0_2] : memref<32x32xf32, #tpu.memory_space<vmem>>, vector<32x32xf32>
    %cst = arith.constant dense<0.000000e+00> : vector<2x32xf32>
    %2 = tpu.matmul %0, %1, %cst {dimension_numbers = #tpu.dot_dimension_numbers<[1], [0], [0], [1], [0, 0, 1, 1], [], []>} : vector<2x32xf32>, vector<32x32xf32>, vector<2x32xf32> -> vector<2x32xf32>
    %c0_3 = arith.constant 0 : index
    %c0_4 = arith.constant 0 : index
    %3 = vector.load %arg6[%c0_3, %c0_4] : memref<1x32xf32, #tpu.memory_space<vmem>>, vector<1x32xf32>
    %4 = vector.broadcast %3 : vector<1x32xf32> to vector<2x32xf32>
    %5 = arith.addf %2, %4 : vector<2x32xf32>
    %c0_5 = arith.constant 0 : index
    %c0_6 = arith.constant 0 : index
    %c0_7 = arith.constant 0 : index
    %6 = vector.load %arg3[%c0_5, %c0_6, %c0_7] : memref<2x128x64xf32, #tpu.memory_space<vmem>>, vector<2x128x64xf32>
    %7 = vector.shape_cast %6 : vector<2x128x64xf32> to vector<256x64xf32>
    %c0_8 = arith.constant 0 : index
    %c0_9 = arith.constant 0 : index
    %8 = vector.load %arg5[%c0_8, %c0_9] : memref<64x32xf32, #tpu.memory_space<vmem>>, vector<64x32xf32>
    %cst_10 = arith.constant dense<0.000000e+00> : vector<256x32xf32>
    %9 = tpu.matmul %7, %8, %cst_10 {dimension_numbers = #tpu.dot_dimension_numbers<[1], [0], [0], [1], [0, 0, 1, 1], [], []>} : vector<256x64xf32>, vector<64x32xf32>, vector<256x32xf32> -> vector<256x32xf32>
    %10 = vector.shape_cast %9 : vector<256x32xf32> to vector<2x128x32xf32>
    %11 = vector.shape_cast %5 : vector<2x32xf32> to vector<2x1x32xf32>
    %12 = vector.broadcast %11 : vector<2x1x32xf32> to vector<2x128x32xf32>
    %13 = arith.addf %10, %12 : vector<2x128x32xf32>
    %14 = math.tanh %13 : vector<2x128x32xf32>
    %c0_11 = arith.constant 0 : index
    %c0_12 = arith.constant 0 : index
    %15 = vector.load %arg7[%c0_11, %c0_12] : memref<1x32xf32, #tpu.memory_space<vmem>>, vector<1x32xf32>
    %16 = vector.shape_cast %15 : vector<1x32xf32> to vector<1x1x32xf32>
    %17 = vector.broadcast %16 : vector<1x1x32xf32> to vector<2x128x32xf32>
    %18 = arith.mulf %14, %17 : vector<2x128x32xf32>
    %cst_13 = arith.constant dense<0.000000e+00> : vector<2x128xf32>
    %19 = vector.multi_reduction <add>, %18, %cst_13 [2] : vector<2x128x32xf32> to vector<2x128xf32>
    %c128_i32 = arith.constant 128 : i32
    %20 = arith.muli %arg1, %c128_i32 : i32
    %21 = tpu.iota {dimensions = array<i32: 1>} : vector<2x128xi32>
    %22 = vector.broadcast %20 : i32 to vector<2x128xi32>
    %23 = arith.addi %22, %21 : vector<2x128xi32>
    %c8_i32 = arith.constant 8 : i32
    %24 = vector.broadcast %c8_i32 : i32 to vector<2x128xi32>
    %25 = arith.cmpi slt, %23, %24 : vector<2x128xi32>
    %cst_14 = arith.constant -1.000000e+30 : f32
    %26 = vector.broadcast %cst_14 : f32 to vector<2x128xf32>
    %27 = arith.select %25, %19, %26 : vector<2x128xi1>, vector<2x128xf32>
    %c128_i32_15 = arith.constant 128 : i32
    %28 = arith.muli %arg1, %c128_i32_15 : i32
    %29 = tpu.assume_multiple %28, 128 : i32
    %c0_16 = arith.constant 0 : index
    %30 = arith.index_cast %29 : i32 to index
    %31 = vector.load %arg8[%c0_16, %30] : memref<2x128xf32, #tpu.memory_space<vmem>>, vector<2x128xf32>
    tpu.vector_store %arg8[%c0_16, %30], %27 {strides = array<i32>} : memref<2x128xf32, #tpu.memory_space<vmem>>, vector<2x128xf32>,
    %c0_i32 = arith.constant 0 : i32
    %32 = arith.cmpi eq, %arg1, %c0_i32 : i32
    %33 = arith.extui %32 : i1 to i32
    %c0_i32_17 = arith.constant 0 : i32
    %34 = arith.cmpi ne, %33, %c0_i32_17 : i32
    scf.if %34 {
      %c0_18 = arith.constant 0 : index
      %c0_19 = arith.constant 0 : index
      %35 = vector.load %arg8[%c0_18, %c0_19] : memref<2x128xf32, #tpu.memory_space<vmem>>, vector<2x128xf32>
      %cst_20 = arith.constant dense<0xFF800000> : vector<2xf32>
      %36 = vector.multi_reduction <maximumf>, %35, %cst_20 [1] : vector<2x128xf32> to vector<2xf32>
      %37 = vector.shape_cast %36 : vector<2xf32> to vector<2x1xf32>
      %38 = vector.broadcast %37 : vector<2x1xf32> to vector<2x128xf32>
      %39 = arith.subf %35, %38 : vector<2x128xf32>
      %40 = math.exp %39 : vector<2x128xf32>
      %cst_21 = arith.constant dense<0.000000e+00> : vector<2xf32>
      %41 = vector.multi_reduction <add>, %40, %cst_21 [1] : vector<2x128xf32> to vector<2xf32>
      %42 = vector.shape_cast %41 : vector<2xf32> to vector<2x1xf32>
      %43 = tpu.reciprocal %42 {approx = true} : vector<2x1xf32> -> vector<2x1xf32>
      %44 = vector.broadcast %43 : vector<2x1xf32> to vector<2x128xf32>
      %45 = arith.mulf %40, %44 : vector<2x128xf32>
      %c0_22 = arith.constant 0 : index
      %c0_23 = arith.constant 0 : index
      %46 = vector.load %arg8[%c0_22, %c0_23] : memref<2x128xf32, #tpu.memory_space<vmem>>, vector<2x128xf32>
      tpu.vector_store %arg8[%c0_22, %c0_23], %45 {strides = array<i32>} : memref<2x128xf32, #tpu.memory_space<vmem>>, vector<2x128xf32>,
    } else {
    }
    return
  }
  func.func @transform_0(%arg0: i32, %arg1: i32) -> (i32, i32) {
    %c0_i32 = arith.constant 0 : i32
    %c0_i32_0 = arith.constant 0 : i32
    return %arg0, %c0_i32 : i32, i32
  }
  func.func @transform_1(%arg0: i32, %arg1: i32) -> (i32, i32, i32) {
    %c0_i32 = arith.constant 0 : i32
    %c0_i32_0 = arith.constant 0 : i32
    return %arg0, %arg1, %c0_i32 : i32, i32, i32
  }
  func.func @transform_2(%arg0: i32, %arg1: i32) -> (i32, i32) {
    %c0_i32 = arith.constant 0 : i32
    %c0_i32_0 = arith.constant 0 : i32
    %c0_i32_1 = arith.constant 0 : i32
    return %c0_i32, %c0_i32_0 : i32, i32
  }
  func.func @transform_3(%arg0: i32, %arg1: i32) -> (i32, i32) {
    %c0_i32 = arith.constant 0 : i32
    %c0_i32_0 = arith.constant 0 : i32
    %c0_i32_1 = arith.constant 0 : i32
    return %c0_i32, %c0_i32_0 : i32, i32
  }
  func.func @transform_4(%arg0: i32, %arg1: i32) -> (i32, i32) {
    %c0_i32 = arith.constant 0 : i32
    %c0_i32_0 = arith.constant 0 : i32
    %c0_i32_1 = arith.constant 0 : i32
    return %c0_i32, %c0_i32_0 : i32, i32
  }
  func.func @transform_5(%arg0: i32, %arg1: i32) -> (i32, i32) {
    %c0_i32 = arith.constant 0 : i32
    %c0_i32_0 = arith.constant 0 : i32
    %c0_i32_1 = arith.constant 0 : i32
    return %c0_i32, %c0_i32_0 : i32, i32
  }
  func.func @transform_6(%arg0: i32, %arg1: i32) -> (i32, i32) {
    %c0_i32 = arith.constant 0 : i32
    %c0_i32_0 = arith.constant 0 : i32
    return %arg0, %c0_i32 : i32, i32
  }
}

</mosaic_0001>

<llo_original>
// kernel: tpu_custom_call.1
$region0: #{tpu_custom_call.1}
  #allocation0 [shape = 'u32[]', space=smem, size = 0x4, offset = 0x4, fixed_abs, tag = 'smem constant byte address 0x4 - core index']
  #allocation1 [shape = 'u32[144,128]{1,0:T(1,128)}', space=vmem, size = 0x12000, scoped, tag = 'internal scratch']
  %s0 = inlined_call_operand.vmem [shape: f32[2,32], index: 0, kind: input, shape index: {}]
  %s1 = inlined_call_operand.vmem [shape: f32[2,8,64], index: 1, kind: input, shape index: {}]
  %s2 = inlined_call_operand.vmem [shape: f32[32,32], index: 2, kind: input, shape index: {}]
  %s3 = inlined_call_operand.vmem [shape: f32[64,32], index: 3, kind: input, shape index: {}]
  %s4 = inlined_call_operand.vmem [shape: f32[1,32], index: 4, kind: input, shape index: {}]
  %s5 = inlined_call_operand.vmem [shape: f32[1,32], index: 5, kind: input, shape index: {}]
  %s6 = inlined_call_operand.hbm [shape: f32[2,128], index: 6, kind: output, shape index: {}]
  %s7 = sld [smem:[#allocation0]]
  $region76: #{tpu_custom_call.1} parent=0
    _
  %s9 = ssub.s32 1, %s7
  %s10 = scalar_select 0, %s9, %s7
  $region1: #{tpu_custom_call.1} parent=0
    #allocation2 [shape = 'u8[131072]{0}', space=vmem, size = 0x20000, scoped, tag = 'input window, operand 1, single buffered']
    #allocation3 [shape = 'u8[1024]{0}', space=vmem, size = 0x400, scoped, tag = 'output window, operand 0, single buffered']
    #allocation4 [shape = 's32[1]{0}', space=sflag, size = 0x4, scoped, tag = 'scoped memory for tpu_custom_call.1']
    %11 = vsyncpa [#allocation4], 0
    // Predicated region
    $region2: #{tpu_custom_call.1} parent=1 // pred_check
      _
    $region3: #{tpu_custom_call.1} parent=1 // pred_check_branch
      %13 = sbr.rel (0) target = $region5
    $region4: #{tpu_custom_call.1} parent=1 // pred_region
      _
    $region5: #{tpu_custom_call.1} parent=1 // pred_fallthru
      _
    // Predicated region
    $region6: #{tpu_custom_call.1} parent=1 // pred_check
      _
    $region7: #{tpu_custom_call.1} parent=1 // pred_check_branch
      %15 = sbr.rel (0) target = $region9
    $region8: #{tpu_custom_call.1} parent=1 // pred_region
      // Predicated region
      $region10: #{tpu_custom_call.1} parent=8 // pred_check
        _
      $region11: #{tpu_custom_call.1} parent=8 // pred_check_branch
        %17 = sbr.rel (0) target = $region13
      $region12: #{tpu_custom_call.1} parent=8 // pred_region
        // Predicated region
        $region14: #{tpu_custom_call.1} parent=12 // pred_check
          _
        $region15: #{tpu_custom_call.1} parent=12 // pred_check_branch
          %19 = sbr.rel (0) target = $region17
        $region16: #{tpu_custom_call.1} parent=12 // pred_region
          // Predicated region
          $region29: #{tpu_custom_call.1} parent=16 // pred_check
            _
          $region30: #{tpu_custom_call.1} parent=16 // pred_check_branch
            %37 = sbr.rel (0) target = $region32
          $region31: #{tpu_custom_call.1} parent=16 // pred_region
            loop: start=0, step=1, limit=1
            $region33: #{tpu_custom_call.1} parent=31 // loop_pre_header
              _
            $region34: #{tpu_custom_call.1} parent=31 // loop_header
              %s39 = sphi 0, %s43
              %p40 = scmp.ge.s32.totalorder %s39, 1
              %s44 = sphi %s1, %s1
              %s45 = sphi [#allocation2], [#allocation2]
            $region35: #{tpu_custom_call.1} parent=31 // loop_header_branch
              %42 = sbr.rel (%p40) target = $region39
            $region36: #{tpu_custom_call.1} parent=31 // loop_body
              %v46 = vld [vmem:[%s44] sm:$0xff]
              %47 = vst [vmem:[%s45] sm:$0xff] %v46
              %v48 = vld [vmem:[%s44 + $0x8] sm:$0xff]
              %49 = vst [vmem:[%s45 + $0x80] sm:$0xff] %v48
            $region37: #{tpu_custom_call.1} parent=31 // loop_footer
              %s43 = sadd.s32 1, %s39
            $region38: #{tpu_custom_call.1} parent=31 // loop_footer_branch
              %38 = sbr.rel target = $region34
            $region39: #{tpu_custom_call.1} parent=31 // loop_exit
              _
          $region32: #{tpu_custom_call.1} parent=16 // pred_fallthru
            _
          // Predicated region
          $region40: #{tpu_custom_call.1} parent=16 // pred_check
            _
          $region41: #{tpu_custom_call.1} parent=16 // pred_check_branch
            %51 = sbr.rel target = $region43
          $region42: #{tpu_custom_call.1} parent=16 // pred_region
            _
          $region43: #{tpu_custom_call.1} parent=16 // pred_fallthru
            _
        $region17: #{tpu_custom_call.1} parent=12 // pred_fallthru
          _
        // Predicated region
        $region18: #{tpu_custom_call.1} parent=12 // pred_check
          _
        $region19: #{tpu_custom_call.1} parent=12 // pred_check_branch
          %21 = sbr.rel target = $region21
        $region20: #{tpu_custom_call.1} parent=12 // pred_region
          %s23 = ssub.s32 256, 1
          loop: start=0, step=1, limit=1
          $region22: #{tpu_custom_call.1} parent=20 // loop_pre_header
            _
          $region23: #{tpu_custom_call.1} parent=20 // loop_header
            %s25 = sphi 0, %s29
            %p26 = scmp.ge.s32.totalorder %s25, 1
            %s30 = sphi %s1, %s1
            %s31 = sphi [#allocation2], [#allocation2]
          $region24: #{tpu_custom_call.1} parent=20 // loop_header_branch
            %28 = sbr.rel (%p26) target = $region28
          $region25: #{tpu_custom_call.1} parent=20 // loop_body
            %v32 = vld [vmem:[%s30] sm:%s23]
            %33 = vst [vmem:[%s31] sm:%s23] %v32
            %v34 = vld [vmem:[%s30 + $0x8] sm:%s23]
            %35 = vst [vmem:[%s31 + $0x80] sm:%s23] %v34
          $region26: #{tpu_custom_call.1} parent=20 // loop_footer
            %s29 = sadd.s32 1, %s25
          $region27: #{tpu_custom_call.1} parent=20 // loop_footer_branch
            %24 = sbr.rel target = $region23
          $region28: #{tpu_custom_call.1} parent=20 // loop_exit
            _
        $region21: #{tpu_custom_call.1} parent=12 // pred_fallthru
          _
      $region13: #{tpu_custom_call.1} parent=8 // pred_fallthru
        _
      %52 = vnop
    $region9: #{tpu_custom_call.1} parent=1 // pred_fallthru
      _
    // Predicated region
    $region44: #{tpu_custom_call.1} parent=1 // pred_check
      _
    $region45: #{tpu_custom_call.1} parent=1 // pred_check_branch
      %54 = sbr.rel (0) target = $region47
    $region46: #{tpu_custom_call.1} parent=1 // pred_region
      _
    $region47: #{tpu_custom_call.1} parent=1 // pred_fallthru
      _
    // Predicated region
    $region48: #{tpu_custom_call.1} parent=1 // pred_check
      _
    $region49: #{tpu_custom_call.1} parent=1 // pred_check_branch
      %56 = sbr.rel (0) target = $region51
    $region50: #{tpu_custom_call.1} parent=1 // pred_region
      _
    $region51: #{tpu_custom_call.1} parent=1 // pred_fallthru
      _
    // Predicated region
    $region52: #{tpu_custom_call.1} parent=1 // pred_check
      _
    $region53: #{tpu_custom_call.1} parent=1 // pred_check_branch
      %58 = sbr.rel (0) target = $region55
    $region54: #{tpu_custom_call.1} parent=1 // pred_region
      _
    $region55: #{tpu_custom_call.1} parent=1 // pred_fallthru
      _
    // Predicated region
    $region56: #{tpu_custom_call.1} parent=1 // pred_check
      _
    $region57: #{tpu_custom_call.1} parent=1 // pred_check_branch
      %60 = sbr.rel (0) target = $region59
    $region58: #{tpu_custom_call.1} parent=1 // pred_region
      _
    $region59: #{tpu_custom_call.1} parent=1 // pred_fallthru
      _
    // Predicated region
    $region60: #{tpu_custom_call.1} parent=1 // pred_check
      _
    $region61: #{tpu_custom_call.1} parent=1 // pred_check_branch
      %62 = sbr.rel (0) target = $region63
    $region62: #{tpu_custom_call.1} parent=1 // pred_region
      _
    $region63: #{tpu_custom_call.1} parent=1 // pred_fallthru
      _
    %v63 = vld [vmem:[%s0] sm:$0x3]
    %v64 = vld [vmem:[%s2] sm:$0xff]
    %v65 = vld [vmem:[%s2 + $0x8] sm:$0xff]
    %v66 = vld [vmem:[%s2 + $0x10] sm:$0xff]
    %v67 = vld [vmem:[%s2 + $0x18] sm:$0xff]
    %v68 = vld [vmem:[%s4] sm:$0x1]
    %v70 = vlaneseq
    %v71 = vshrl.u32 %v70, 7
    %v72 = vsub.s32 0, %v71
    %v73 = vrot.slane %v68, %v72
    %vm75 = vcmask 261120
    %v77 = vsel %vm75, %v63, 0
    %79 = vmatprep.subr.mxu0 0.0
    %80 = vmatpush1.msra.mxu0 0.0
    %81 = vmatprep.subr.mxu0 0.0
    %82 = vmatpush1.msra.mxu0 0.0
    %83 = vmatprep.subr.mxu0 0.0
    %84 = vmatpush1.msra.mxu0 0.0
    %85 = vmatprep.subr.mxu0 0.0
    %86 = vmatpush1.msra.mxu0 0.0
    %87 = vmatprep.subr.mxu0 0.0
    %88 = vmatpush1.msra.mxu0 0.0
    %89 = vmatprep.subr.mxu0 0.0
    %90 = vmatpush1.msra.mxu0 0.0
    %91 = vmatprep.subr.mxu0 0.0
    %92 = vmatpush1.msra.mxu0 0.0
    %93 = vmatprep.subr.mxu0 0.0
    %94 = vmatpush1.msra.mxu0 0.0
    %95 = vmatprep.subr.mxu0 0.0
    %96 = vmatpush1.msra.mxu0 0.0
    %97 = vmatprep.subr.mxu0 0.0
    %98 = vmatpush1.msra.mxu0 0.0
    %99 = vmatprep.subr.mxu0 0.0
    %100 = vmatpush1.msra.mxu0 0.0
    %101 = vmatprep.subr.mxu0 0.0
    %102 = vmatpush1.msra.mxu0 0.0
    %103 = vmatprep.subr.mxu0 0.0
    %104 = vmatpush1.msra.mxu0 %v67
    %105 = vmatprep.subr.mxu0 0.0
    %106 = vmatpush1.msra.mxu0 %v66
    %107 = vmatprep.subr.mxu0 0.0
    %108 = vmatpush1.msra.mxu0 %v65
    %109 = vmatprep.subr.mxu0 0.0
    %110 = vmatpush1.msra.mxu0 %v64
    %111 = vmatprep.subr.mxu0 0.0
    %112 = vmatpush2.msra.mxu0 0.0
    %113 = vmatprep.subr.mxu0 0.0
    %114 = vmatpush2.msra.mxu0 0.0
    %115 = vmatprep.subr.mxu0 0.0
    %116 = vmatpush2.msra.mxu0 0.0
    %117 = vmatprep.subr.mxu0 0.0
    %118 = vmatpush2.msra.mxu0 0.0
    %119 = vmatprep.subr.mxu0 0.0
    %120 = vmatpush2.msra.mxu0 0.0
    %121 = vmatprep.subr.mxu0 0.0
    %122 = vmatpush2.msra.mxu0 0.0
    %123 = vmatprep.subr.mxu0 0.0
    %124 = vmatpush2.msra.mxu0 0.0
    %125 = vmatprep.subr.mxu0 0.0
    %126 = vmatpush2.msra.mxu0 0.0
    %127 = vmatprep.subr.mxu0 0.0
    %128 = vmatpush2.msra.mxu0 0.0
    %129 = vmatprep.subr.mxu0 0.0
    %130 = vmatpush2.msra.mxu0 0.0
    %131 = vmatprep.subr.mxu0 0.0
    %132 = vmatpush2.msra.mxu0 0.0
    %133 = vmatprep.subr.mxu0 0.0
    %134 = vmatpush2.msra.mxu0 0.0
    %135 = vmatprep.subr.mxu0 0.0
    %136 = vmatpush2.msra.mxu0 0.0
    %137 = vmatprep.subr.mxu0 0.0
    %138 = vmatpush2.msra.mxu0 0.0
    %139 = vmatprep.subr.mxu0 0.0
    %140 = vmatpush2.msra.mxu0 0.0
    %141 = vmatprep.subr.mxu0 0.0
    %142 = vmatpush2.msra.mxu0 0.0
    %143 = vmatprep.mubr.f32.mxu0 0.0
    %144 = vmatmul.mubr.f32.gmra.mxu0 %v77
    %v145 = vpop.f32.mrf.mxu0
    %v146 = vadd.f32 %v73, %v145
    %v147 = vpop.f32.mrf.mxu0
    %148 = vdwg.mxu0
    %v149 = vld [vmem:[#allocation2] sm:$0xff]
    %v150 = vld [vmem:[#allocation2 + $0x8] sm:$0xff]
    %v151 = vld [vmem:[#allocation2 + $0x10] sm:$0xff]
    %v152 = vld [vmem:[#allocation2 + $0x18] sm:$0xff]
    %v153 = vld [vmem:[#allocation2 + $0x20] sm:$0xff]
    %v154 = vld [vmem:[#allocation2 + $0x28] sm:$0xff]
    %v155 = vld [vmem:[#allocation2 + $0x30] sm:$0xff]
    %v156 = vld [vmem:[#allocation2 + $0x38] sm:$0xff]
    %v157 = vld [vmem:[#allocation2 + $0x40] sm:$0xff]
    %v158 = vld [vmem:[#allocation2 + $0x48] sm:$0xff]
    %v159 = vld [vmem:[#allocation2 + $0x50] sm:$0xff]
    %v160 = vld [vmem:[#allocation2 + $0x58] sm:$0xff]
    %v161 = vld [vmem:[#allocation2 + $0x60] sm:$0xff]
    %v162 = vld [vmem:[#allocation2 + $0x68] sm:$0xff]
    %v163 = vld [vmem:[#allocation2 + $0x70] sm:$0xff]
    %v164 = vld [vmem:[#allocation2 + $0x78] sm:$0xff]
    %v165 = vld [vmem:[#allocation2 + $0x80] sm:$0xff]
    %v166 = vld [vmem:[#allocation2 + $0x88] sm:$0xff]
    %v167 = vld [vmem:[#allocation2 + $0x90] sm:$0xff]
    %v168 = vld [vmem:[#allocation2 + $0x98] sm:$0xff]
    %v169 = vld [vmem:[#allocation2 + $0xa0] sm:$0xff]
    %v170 = vld [vmem:[#allocation2 + $0xa8] sm:$0xff]
    %v171 = vld [vmem:[#allocation2 + $0xb0] sm:$0xff]
    %v172 = vld [vmem:[#allocation2 + $0xb8] sm:$0xff]
    %v173 = vld [vmem:[#allocation2 + $0xc0] sm:$0xff]
    %v174 = vld [vmem:[#allocation2 + $0xc8] sm:$0xff]
    %v175 = vld [vmem:[#allocation2 + $0xd0] sm:$0xff]
    %v176 = vld [vmem:[#allocation2 + $0xd8] sm:$0xff]
    %v177 = vld [vmem:[#allocation2 + $0xe0] sm:$0xff]
    %v178 = vld [vmem:[#allocation2 + $0xe8] sm:$0xff]
    %v179 = vld [vmem:[#allocation2 + $0xf0] sm:$0xff]
    %v180 = vld [vmem:[#allocation2 + $0xf8] sm:$0xff]
    %v181 = vld [vmem:[%s3] sm:$0xff]
    %v182 = vld [vmem:[%s3 + $0x8] sm:$0xff]
    %v183 = vld [vmem:[%s3 + $0x10] sm:$0xff]
    %v184 = vld [vmem:[%s3 + $0x18] sm:$0xff]
    %v185 = vld [vmem:[%s3 + $0x20] sm:$0xff]
    %v186 = vld [vmem:[%s3 + $0x28] sm:$0xff]
    %v187 = vld [vmem:[%s3 + $0x30] sm:$0xff]
    %v188 = vld [vmem:[%s3 + $0x38] sm:$0xff]
    %vm189 = vcmask 523264
    %v191 = vsel %vm189, %v149, 0
    %v194 = vsel %vm189, %v150, 0
    %v197 = vsel %vm189, %v151, 0
    %v200 = vsel %vm189, %v152, 0
    %v203 = vsel %vm189, %v153, 0
    %v206 = vsel %vm189, %v154, 0
    %v209 = vsel %vm189, %v155, 0
    %v212 = vsel %vm189, %v156, 0
    %v215 = vsel %vm189, %v157, 0
    %v218 = vsel %vm189, %v158, 0
    %v221 = vsel %vm189, %v159, 0
    %v224 = vsel %vm189, %v160, 0
    %v227 = vsel %vm189, %v161, 0
    %v230 = vsel %vm189, %v162, 0
    %v233 = vsel %vm189, %v163, 0
    %v236 = vsel %vm189, %v164, 0
    %v239 = vsel %vm189, %v165, 0
    %v242 = vsel %vm189, %v166, 0
    %v245 = vsel %vm189, %v167, 0
    %v248 = vsel %vm189, %v168, 0
    %v251 = vsel %vm189, %v169, 0
    %v254 = vsel %vm189, %v170, 0
    %v257 = vsel %vm189, %v171, 0
    %v260 = vsel %vm189, %v172, 0
    %v263 = vsel %vm189, %v173, 0
    %v266 = vsel %vm189, %v174, 0
    %v269 = vsel %vm189, %v175, 0
    %v272 = vsel %vm189, %v176, 0
    %v275 = vsel %vm189, %v177, 0
    %v278 = vsel %vm189, %v178, 0
    %v281 = vsel %vm189, %v179, 0
    %v284 = vsel %vm189, %v180, 0
    %286 = vmatprep.subr.mxu0 0.0
    %287 = vmatpush1.msra.mxu0 0.0
    %288 = vmatprep.subr.mxu0 0.0
    %289 = vmatpush1.msra.mxu0 0.0
    %290 = vmatprep.subr.mxu0 0.0
    %291 = vmatpush1.msra.mxu0 0.0
    %292 = vmatprep.subr.mxu0 0.0
    %293 = vmatpush1.msra.mxu0 0.0
    %294 = vmatprep.subr.mxu0 0.0
    %295 = vmatpush1.msra.mxu0 0.0
    %296 = vmatprep.subr.mxu0 0.0
    %297 = vmatpush1.msra.mxu0 0.0
    %298 = vmatprep.subr.mxu0 0.0
    %299 = vmatpush1.msra.mxu0 0.0
    %300 = vmatprep.subr.mxu0 0.0
    %301 = vmatpush1.msra.mxu0 0.0
    %302 = vmatprep.subr.mxu0 0.0
    %303 = vmatpush1.msra.mxu0 %v188
    %304 = vmatprep.subr.mxu0 0.0
    %305 = vmatpush1.msra.mxu0 %v187
    %306 = vmatprep.subr.mxu0 0.0
    %307 = vmatpush1.msra.mxu0 %v186
    %308 = vmatprep.subr.mxu0 0.0
    %309 = vmatpush1.msra.mxu0 %v185
    %310 = vmatprep.subr.mxu0 0.0
    %311 = vmatpush1.msra.mxu0 %v184
    %312 = vmatprep.subr.mxu0 0.0
    %313 = vmatpush1.msra.mxu0 %v183
    %314 = vmatprep.subr.mxu0 0.0
    %315 = vmatpush1.msra.mxu0 %v182
    %316 = vmatprep.subr.mxu0 0.0
    %317 = vmatpush1.msra.mxu0 %v181
    %318 = vmatprep.subr.mxu0 0.0
    %319 = vmatpush2.msra.mxu0 0.0
    %320 = vmatprep.subr.mxu0 0.0
    %321 = vmatpush2.msra.mxu0 0.0
    %322 = vmatprep.subr.mxu0 0.0
    %323 = vmatpush2.msra.mxu0 0.0
    %324 = vmatprep.subr.mxu0 0.0
    %325 = vmatpush2.msra.mxu0 0.0
    %326 = vmatprep.subr.mxu0 0.0
    %327 = vmatpush2.msra.mxu0 0.0
    %328 = vmatprep.subr.mxu0 0.0
    %329 = vmatpush2.msra.mxu0 0.0
    %330 = vmatprep.subr.mxu0 0.0
    %331 = vmatpush2.msra.mxu0 0.0
    %332 = vmatprep.subr.mxu0 0.0
    %333 = vmatpush2.msra.mxu0 0.0
    %334 = vmatprep.subr.mxu0 0.0
    %335 = vmatpush2.msra.mxu0 0.0
    %336 = vmatprep.subr.mxu0 0.0
    %337 = vmatpush2.msra.mxu0 0.0
    %338 = vmatprep.subr.mxu0 0.0
    %339 = vmatpush2.msra.mxu0 0.0
    %340 = vmatprep.subr.mxu0 0.0
    %341 = vmatpush2.msra.mxu0 0.0
    %342 = vmatprep.subr.mxu0 0.0
    %343 = vmatpush2.msra.mxu0 0.0
    %344 = vmatprep.subr.mxu0 0.0
    %345 = vmatpush2.msra.mxu0 0.0
    %346 = vmatprep.subr.mxu0 0.0
    %347 = vmatpush2.msra.mxu0 0.0
    %348 = vmatprep.subr.mxu0 0.0
    %349 = vmatpush2.msra.mxu0 0.0
    %350 = vmatprep.mubr.f32.mxu0 0.0
    %351 = vmatmul.mubr.f32.gmra.mxu0 %v191
    %v352 = vpop.f32.mrf.mxu0
    %v353 = vadd.f32 0.0, %v352
    %v354 = vpop.f32.mrf.mxu0
    %355 = vmatprep.mubr.f32.mxu0 0.0
    %356 = vmatmul.mubr.f32.gmra.mxu0 %v194
    %v357 = vpop.f32.mrf.mxu0
    %v358 = vadd.f32 0.0, %v357
    %v359 = vpop.f32.mrf.mxu0
    %360 = vmatprep.mubr.f32.mxu0 0.0
    %361 = vmatmul.mubr.f32.gmra.mxu0 %v197
    %v362 = vpop.f32.mrf.mxu0
    %v363 = vadd.f32 0.0, %v362
    %v364 = vpop.f32.mrf.mxu0
    %365 = vmatprep.mubr.f32.mxu0 0.0
    %366 = vmatmul.mubr.f32.gmra.mxu0 %v200
    %v367 = vpop.f32.mrf.mxu0
    %v368 = vadd.f32 0.0, %v367
    %v369 = vpop.f32.mrf.mxu0
    %370 = vmatprep.mubr.f32.mxu0 0.0
    %371 = vmatmul.mubr.f32.gmra.mxu0 %v203
    %v372 = vpop.f32.mrf.mxu0
    %v373 = vadd.f32 0.0, %v372
    %v374 = vpop.f32.mrf.mxu0
    %375 = vmatprep.mubr.f32.mxu0 0.0
    %376 = vmatmul.mubr.f32.gmra.mxu0 %v206
    %v377 = vpop.f32.mrf.mxu0
    %v378 = vadd.f32 0.0, %v377
    %v379 = vpop.f32.mrf.mxu0
    %380 = vmatprep.mubr.f32.mxu0 0.0
    %381 = vmatmul.mubr.f32.gmra.mxu0 %v209
    %v382 = vpop.f32.mrf.mxu0
    %v383 = vadd.f32 0.0, %v382
    %v384 = vpop.f32.mrf.mxu0
    %385 = vmatprep.mubr.f32.mxu0 0.0
    %386 = vmatmul.mubr.f32.gmra.mxu0 %v212
    %v387 = vpop.f32.mrf.mxu0
    %v388 = vadd.f32 0.0, %v387
    %v389 = vpop.f32.mrf.mxu0
    %390 = vmatprep.mubr.f32.mxu0 0.0
    %391 = vmatmul.mubr.f32.gmra.mxu0 %v215
    %v392 = vpop.f32.mrf.mxu0
    %v393 = vadd.f32 0.0, %v392
    %v394 = vpop.f32.mrf.mxu0
    %395 = vmatprep.mubr.f32.mxu0 0.0
    %396 = vmatmul.mubr.f32.gmra.mxu0 %v218
    %v397 = vpop.f32.mrf.mxu0
    %v398 = vadd.f32 0.0, %v397
    %v399 = vpop.f32.mrf.mxu0
    %400 = vmatprep.mubr.f32.mxu0 0.0
    %401 = vmatmul.mubr.f32.gmra.mxu0 %v221
    %v402 = vpop.f32.mrf.mxu0
    %v403 = vadd.f32 0.0, %v402
    %v404 = vpop.f32.mrf.mxu0
    %405 = vmatprep.mubr.f32.mxu0 0.0
    %406 = vmatmul.mubr.f32.gmra.mxu0 %v224
    %v407 = vpop.f32.mrf.mxu0
    %v408 = vadd.f32 0.0, %v407
    %v409 = vpop.f32.mrf.mxu0
    %410 = vmatprep.mubr.f32.mxu0 0.0
    %411 = vmatmul.mubr.f32.gmra.mxu0 %v227
    %v412 = vpop.f32.mrf.mxu0
    %v413 = vadd.f32 0.0, %v412
    %v414 = vpop.f32.mrf.mxu0
    %415 = vmatprep.mubr.f32.mxu0 0.0
    %416 = vmatmul.mubr.f32.gmra.mxu0 %v230
    %v417 = vpop.f32.mrf.mxu0
    %v418 = vadd.f32 0.0, %v417
    %v419 = vpop.f32.mrf.mxu0
    %420 = vmatprep.mubr.f32.mxu0 0.0
    %421 = vmatmul.mubr.f32.gmra.mxu0 %v233
    %v422 = vpop.f32.mrf.mxu0
    %v423 = vadd.f32 0.0, %v422
    %v424 = vpop.f32.mrf.mxu0
    %425 = vmatprep.mubr.f32.mxu0 0.0
    %426 = vmatmul.mubr.f32.gmra.mxu0 %v236
    %v427 = vpop.f32.mrf.mxu0
    %v428 = vadd.f32 0.0, %v427
    %v429 = vpop.f32.mrf.mxu0
    %430 = vmatprep.mubr.f32.mxu0 0.0
    %431 = vmatmul.mubr.f32.gmra.mxu0 %v239
    %v432 = vpop.f32.mrf.mxu0
    %v433 = vadd.f32 0.0, %v432
    %v434 = vpop.f32.mrf.mxu0
    %435 = vmatprep.mubr.f32.mxu0 0.0
    %436 = vmatmul.mubr.f32.gmra.mxu0 %v242
    %v437 = vpop.f32.mrf.mxu0
    %v438 = vadd.f32 0.0, %v437
    %v439 = vpop.f32.mrf.mxu0
    %440 = vmatprep.mubr.f32.mxu0 0.0
    %441 = vmatmul.mubr.f32.gmra.mxu0 %v245
    %v442 = vpop.f32.mrf.mxu0
    %v443 = vadd.f32 0.0, %v442
    %v444 = vpop.f32.mrf.mxu0
    %445 = vmatprep.mubr.f32.mxu0 0.0
    %446 = vmatmul.mubr.f32.gmra.mxu0 %v248
    %v447 = vpop.f32.mrf.mxu0
    %v448 = vadd.f32 0.0, %v447
    %v449 = vpop.f32.mrf.mxu0
    %450 = vmatprep.mubr.f32.mxu0 0.0
    %451 = vmatmul.mubr.f32.gmra.mxu0 %v251
    %v452 = vpop.f32.mrf.mxu0
    %v453 = vadd.f32 0.0, %v452
    %v454 = vpop.f32.mrf.mxu0
    %455 = vmatprep.mubr.f32.mxu0 0.0
    %456 = vmatmul.mubr.f32.gmra.mxu0 %v254
    %v457 = vpop.f32.mrf.mxu0
    %v458 = vadd.f32 0.0, %v457
    %v459 = vpop.f32.mrf.mxu0
    %460 = vmatprep.mubr.f32.mxu0 0.0
    %461 = vmatmul.mubr.f32.gmra.mxu0 %v257
    %v462 = vpop.f32.mrf.mxu0
    %v463 = vadd.f32 0.0, %v462
    %v464 = vpop.f32.mrf.mxu0
    %465 = vmatprep.mubr.f32.mxu0 0.0
    %466 = vmatmul.mubr.f32.gmra.mxu0 %v260
    %v467 = vpop.f32.mrf.mxu0
    %v468 = vadd.f32 0.0, %v467
    %v469 = vpop.f32.mrf.mxu0
    %470 = vmatprep.mubr.f32.mxu0 0.0
    %471 = vmatmul.mubr.f32.gmra.mxu0 %v263
    %v472 = vpop.f32.mrf.mxu0
    %v473 = vadd.f32 0.0, %v472
    %v474 = vpop.f32.mrf.mxu0
    %475 = vmatprep.mubr.f32.mxu0 0.0
    %476 = vmatmul.mubr.f32.gmra.mxu0 %v266
    %v477 = vpop.f32.mrf.mxu0
    %v478 = vadd.f32 0.0, %v477
    %v479 = vpop.f32.mrf.mxu0
    %480 = vmatprep.mubr.f32.mxu0 0.0
    %481 = vmatmul.mubr.f32.gmra.mxu0 %v269
    %v482 = vpop.f32.mrf.mxu0
    %v483 = vadd.f32 0.0, %v482
    %v484 = vpop.f32.mrf.mxu0
    %485 = vmatprep.mubr.f32.mxu0 0.0
    %486 = vmatmul.mubr.f32.gmra.mxu0 %v272
    %v487 = vpop.f32.mrf.mxu0
    %v488 = vadd.f32 0.0, %v487
    %v489 = vpop.f32.mrf.mxu0
    %490 = vmatprep.mubr.f32.mxu0 0.0
    %491 = vmatmul.mubr.f32.gmra.mxu0 %v275
    %v492 = vpop.f32.mrf.mxu0
    %v493 = vadd.f32 0.0, %v492
    %v494 = vpop.f32.mrf.mxu0
    %495 = vmatprep.mubr.f32.mxu0 0.0
    %496 = vmatmul.mubr.f32.gmra.mxu0 %v278
    %v497 = vpop.f32.mrf.mxu0
    %v498 = vadd.f32 0.0, %v497
    %v499 = vpop.f32.mrf.mxu0
    %500 = vmatprep.mubr.f32.mxu0 0.0
    %501 = vmatmul.mubr.f32.gmra.mxu0 %v281
    %v502 = vpop.f32.mrf.mxu0
    %v503 = vadd.f32 0.0, %v502
    %v504 = vpop.f32.mrf.mxu0
    %505 = vmatprep.mubr.f32.mxu0 0.0
    %506 = vmatmul.mubr.f32.gmra.mxu0 %v284
    %v507 = vpop.f32.mrf.mxu0
    %v508 = vadd.f32 0.0, %v507
    %v509 = vpop.f32.mrf.mxu0
    %510 = vdwg.mxu0
    %v513 = vunpack.c.l.s4 1966171168
    %v514 = vunpack.c.0.s8 %v513
    %v515 = vlaneseq
    %v516 = vshrl.u32 %v515, 7
    %v517 = vsub.s32 %v514, %v516
    %v518 = vrot.slane %v146, %v517
    %v519 = vcombine.high %v518, %v518
    %v521 = vunpack.c.l.s4 1966171168
    %v522 = vunpack.c.0.s8 %v521
    %v523 = vlaneseq
    %v524 = vshrl.u32 %v523, 7
    %v525 = vsub.s32 %v522, %v524
    %v526 = vrot.slane %v518, %v525
    %v528 = vunpack.c.l.s4 1966171168
    %v529 = vunpack.c.0.s8 %v528
    %v530 = vlaneseq
    %v531 = vshrl.u32 %v530, 7
    %v532 = vsub.s32 %v529, %v531
    %v533 = vrot.slane %v519, %v532
    %v534 = vlaneseq
    %v535 = vshrl.u32 %v534, 7
    %v536 = vsub.s32 0, %v535
    %v537 = vrot.slane %v526, %v536
    %v538 = vlaneseq
    %v539 = vshrl.u32 %v538, 7
    %v540 = vsub.s32 0, %v539
    %v541 = vrot.slane %v533, %v540
    %v544 = vadd.f32 %v353, %v537
    %v545 = vadd.f32 %v358, %v537
    %v546 = vadd.f32 %v363, %v537
    %v547 = vadd.f32 %v368, %v537
    %v548 = vadd.f32 %v373, %v537
    %v549 = vadd.f32 %v378, %v537
    %v550 = vadd.f32 %v383, %v537
    %v551 = vadd.f32 %v388, %v537
    %v552 = vadd.f32 %v393, %v537
    %v553 = vadd.f32 %v398, %v537
    %v554 = vadd.f32 %v403, %v537
    %v555 = vadd.f32 %v408, %v537
    %v556 = vadd.f32 %v413, %v537
    %v557 = vadd.f32 %v418, %v537
    %v558 = vadd.f32 %v423, %v537
    %v559 = vadd.f32 %v428, %v537
    %v560 = vadd.f32 %v433, %v541
    %v561 = vadd.f32 %v438, %v541
    %v562 = vadd.f32 %v443, %v541
    %v563 = vadd.f32 %v448, %v541
    %v564 = vadd.f32 %v453, %v541
    %v565 = vadd.f32 %v458, %v541
    %v566 = vadd.f32 %v463, %v541
    %v567 = vadd.f32 %v468, %v541
    %v568 = vadd.f32 %v473, %v541
    %v569 = vadd.f32 %v478, %v541
    %v570 = vadd.f32 %v483, %v541
    %v571 = vadd.f32 %v488, %v541
    %v572 = vadd.f32 %v493, %v541
    %v573 = vadd.f32 %v498, %v541
    %v574 = vadd.f32 %v503, %v541
    %v575 = vadd.f32 %v508, %v541
    %v576 = vtanh.pop %v544
    %v577 = vtanh.pop %v545
    %v578 = vtanh.pop %v546
    %v579 = vtanh.pop %v547
    %v580 = vtanh.pop %v548
    %v581 = vtanh.pop %v549
    %v582 = vtanh.pop %v550
    %v583 = vtanh.pop %v551
    %v584 = vtanh.pop %v552
    %v585 = vtanh.pop %v553
    %v586 = vtanh.pop %v554
    %v587 = vtanh.pop %v555
    %v588 = vtanh.pop %v556
    %v589 = vtanh.pop %v557
    %v590 = vtanh.pop %v558
    %v591 = vtanh.pop %v559
    %v592 = vtanh.pop %v560
    %v593 = vtanh.pop %v561
    %v594 = vtanh.pop %v562
    %v595 = vtanh.pop %v563
    %v596 = vtanh.pop %v564
    %v597 = vtanh.pop %v565
    %v598 = vtanh.pop %v566
    %v599 = vtanh.pop %v567
    %v600 = vtanh.pop %v568
    %v601 = vtanh.pop %v569
    %v602 = vtanh.pop %v570
    %v603 = vtanh.pop %v571
    %v604 = vtanh.pop %v572
    %v605 = vtanh.pop %v573
    %v606 = vtanh.pop %v574
    %v607 = vtanh.pop %v575
    %v608 = vld [vmem:[%s5] sm:$0x1]
    %v610 = vlaneseq
    %v611 = vshrl.u32 %v610, 7
    %v612 = vsub.s32 0, %v611
    %v613 = vrot.slane %v608, %v612
    %v615 = vmul.f32 %v576, %v613
    %v616 = vmul.f32 %v577, %v613
    %v617 = vmul.f32 %v578, %v613
    %v618 = vmul.f32 %v579, %v613
    %v619 = vmul.f32 %v580, %v613
    %v620 = vmul.f32 %v581, %v613
    %v621 = vmul.f32 %v582, %v613
    %v622 = vmul.f32 %v583, %v613
    %v623 = vmul.f32 %v584, %v613
    %v624 = vmul.f32 %v585, %v613
    %v625 = vmul.f32 %v586, %v613
    %v626 = vmul.f32 %v587, %v613
    %v627 = vmul.f32 %v588, %v613
    %v628 = vmul.f32 %v589, %v613
    %v629 = vmul.f32 %v590, %v613
    %v630 = vmul.f32 %v591, %v613
    %v631 = vmul.f32 %v592, %v613
    %v632 = vmul.f32 %v593, %v613
    %v633 = vmul.f32 %v594, %v613
    %v634 = vmul.f32 %v595, %v613
    %v635 = vmul.f32 %v596, %v613
    %v636 = vmul.f32 %v597, %v613
    %v637 = vmul.f32 %v598, %v613
    %v638 = vmul.f32 %v599, %v613
    %v639 = vmul.f32 %v600, %v613
    %v640 = vmul.f32 %v601, %v613
    %v641 = vmul.f32 %v602, %v613
    %v642 = vmul.f32 %v603, %v613
    %v643 = vmul.f32 %v604, %v613
    %v644 = vmul.f32 %v605, %v613
    %v645 = vmul.f32 %v606, %v613
    %v646 = vmul.f32 %v607, %v613
    %v647 = vsel %vm75, %v615, 0.0
    %648 = vadd.xlane.f32.xlu0 %v647
    %v649 = vpop.xlane.xlu0 %648
    %v650 = vsel %vm75, %v616, 0.0
    %651 = vadd.xlane.f32.xlu0 %v650
    %v652 = vpop.xlane.xlu0 %651
    %v653 = vsel %vm75, %v617, 0.0
    %654 = vadd.xlane.f32.xlu0 %v653
    %v655 = vpop.xlane.xlu0 %654
    %v656 = vsel %vm75, %v618, 0.0
    %657 = vadd.xlane.f32.xlu0 %v656
    %v658 = vpop.xlane.xlu0 %657
    %v659 = vsel %vm75, %v619, 0.0
    %660 = vadd.xlane.f32.xlu0 %v659
    %v661 = vpop.xlane.xlu0 %660
    %v662 = vsel %vm75, %v620, 0.0
    %663 = vadd.xlane.f32.xlu0 %v662
    %v664 = vpop.xlane.xlu0 %663
    %v665 = vsel %vm75, %v621, 0.0
    %666 = vadd.xlane.f32.xlu0 %v665
    %v667 = vpop.xlane.xlu0 %666
    %v668 = vsel %vm75, %v622, 0.0
    %669 = vadd.xlane.f32.xlu0 %v668
    %v670 = vpop.xlane.xlu0 %669
    %v671 = vsel %vm75, %v623, 0.0
    %672 = vadd.xlane.f32.xlu0 %v671
    %v673 = vpop.xlane.xlu0 %672
    %v674 = vsel %vm75, %v624, 0.0
    %675 = vadd.xlane.f32.xlu0 %v674
    %v676 = vpop.xlane.xlu0 %675
    %v677 = vsel %vm75, %v625, 0.0
    %678 = vadd.xlane.f32.xlu0 %v677
    %v679 = vpop.xlane.xlu0 %678
    %v680 = vsel %vm75, %v626, 0.0
    %681 = vadd.xlane.f32.xlu0 %v680
    %v682 = vpop.xlane.xlu0 %681
    %v683 = vsel %vm75, %v627, 0.0
    %684 = vadd.xlane.f32.xlu0 %v683
    %v685 = vpop.xlane.xlu0 %684
    %v686 = vsel %vm75, %v628, 0.0
    %687 = vadd.xlane.f32.xlu0 %v686
    %v688 = vpop.xlane.xlu0 %687
    %v689 = vsel %vm75, %v629, 0.0
    %690 = vadd.xlane.f32.xlu0 %v689
    %v691 = vpop.xlane.xlu0 %690
    %v692 = vsel %vm75, %v630, 0.0
    %693 = vadd.xlane.f32.xlu0 %v692
    %v694 = vpop.xlane.xlu0 %693
    %v695 = vsel %vm75, %v631, 0.0
    %696 = vadd.xlane.f32.xlu0 %v695
    %v697 = vpop.xlane.xlu0 %696
    %v698 = vsel %vm75, %v632, 0.0
    %699 = vadd.xlane.f32.xlu0 %v698
    %v700 = vpop.xlane.xlu0 %699
    %v701 = vsel %vm75, %v633, 0.0
    %702 = vadd.xlane.f32.xlu0 %v701
    %v703 = vpop.xlane.xlu0 %702
    %v704 = vsel %vm75, %v634, 0.0
    %705 = vadd.xlane.f32.xlu0 %v704
    %v706 = vpop.xlane.xlu0 %705
    %v707 = vsel %vm75, %v635, 0.0
    %708 = vadd.xlane.f32.xlu0 %v707
    %v709 = vpop.xlane.xlu0 %708
    %v710 = vsel %vm75, %v636, 0.0
    %711 = vadd.xlane.f32.xlu0 %v710
    %v712 = vpop.xlane.xlu0 %711
    %v713 = vsel %vm75, %v637, 0.0
    %714 = vadd.xlane.f32.xlu0 %v713
    %v715 = vpop.xlane.xlu0 %714
    %v716 = vsel %vm75, %v638, 0.0
    %717 = vadd.xlane.f32.xlu0 %v716
    %v718 = vpop.xlane.xlu0 %717
    %v719 = vsel %vm75, %v639, 0.0
    %720 = vadd.xlane.f32.xlu0 %v719
    %v721 = vpop.xlane.xlu0 %720
    %v722 = vsel %vm75, %v640, 0.0
    %723 = vadd.xlane.f32.xlu0 %v722
    %v724 = vpop.xlane.xlu0 %723
    %v725 = vsel %vm75, %v641, 0.0
    %726 = vadd.xlane.f32.xlu0 %v725
    %v727 = vpop.xlane.xlu0 %726
    %v728 = vsel %vm75, %v642, 0.0
    %729 = vadd.xlane.f32.xlu0 %v728
    %v730 = vpop.xlane.xlu0 %729
    %v731 = vsel %vm75, %v643, 0.0
    %732 = vadd.xlane.f32.xlu0 %v731
    %v733 = vpop.xlane.xlu0 %732
    %v734 = vsel %vm75, %v644, 0.0
    %735 = vadd.xlane.f32.xlu0 %v734
    %v736 = vpop.xlane.xlu0 %735
    %v737 = vsel %vm75, %v645, 0.0
    %738 = vadd.xlane.f32.xlu0 %v737
    %v739 = vpop.xlane.xlu0 %738
    %v740 = vsel %vm75, %v646, 0.0
    %741 = vadd.xlane.f32.xlu0 %v740
    %v742 = vpop.xlane.xlu0 %741
    %s743 = smul.u32 0, 128
    %v744 = vlaneseq
    %v745 = vand.u32 %v744, 127
    %v746 = vstv %s743
    %v747 = vadd.s32 %v746, %v745
    %vm748 = vcmp.lt.s32.totalorder %v747, 8
    %v781 = vlaneseq
    %v782 = vshrl.u32 %v781, 7
    %v783 = vsub.s32 %v745, %v782
    %v784 = vrot.slane %v649, %v783
    %v785 = vadd.s32 %v745, 4294967288
    %v786 = vlaneseq
    %v787 = vshrl.u32 %v786, 7
    %v788 = vsub.s32 %v785, %v787
    %v789 = vrot.slane %v652, %v788
    %vm790 = vcmask 130112
    %v791 = vsel %vm790, %v789, %v784
    %v792 = vadd.s32 %v745, 4294967280
    %v793 = vlaneseq
    %v794 = vshrl.u32 %v793, 7
    %v795 = vsub.s32 %v792, %v794
    %v796 = vrot.slane %v655, %v795
    %vm797 = vcmask 195712
    %v798 = vsel %vm797, %v796, %v791
    %v799 = vadd.s32 %v745, 4294967272
    %v800 = vlaneseq
    %v801 = vshrl.u32 %v800, 7
    %v802 = vsub.s32 %v799, %v801
    %v803 = vrot.slane %v658, %v802
    %vm804 = vcmask 261312
    %v805 = vsel %vm804, %v803, %v798
    %v806 = vadd.s32 %v745, 4294967264
    %v807 = vlaneseq
    %v808 = vshrl.u32 %v807, 7
    %v809 = vsub.s32 %v806, %v808
    %v810 = vrot.slane %v661, %v809
    %vm811 = vcmask 326912
    %v812 = vsel %vm811, %v810, %v805
    %v813 = vadd.s32 %v745, 4294967256
    %v814 = vlaneseq
    %v815 = vshrl.u32 %v814, 7
    %v816 = vsub.s32 %v813, %v815
    %v817 = vrot.slane %v664, %v816
    %vm818 = vcmask 392512
    %v819 = vsel %vm818, %v817, %v812
    %v820 = vadd.s32 %v745, 4294967248
    %v821 = vlaneseq
    %v822 = vshrl.u32 %v821, 7
    %v823 = vsub.s32 %v820, %v822
    %v824 = vrot.slane %v667, %v823
    %vm825 = vcmask 458112
    %v826 = vsel %vm825, %v824, %v819
    %v827 = vadd.s32 %v745, 4294967240
    %v828 = vlaneseq
    %v829 = vshrl.u32 %v828, 7
    %v830 = vsub.s32 %v827, %v829
    %v831 = vrot.slane %v670, %v830
    %vm832 = vcmask 523712
    %v833 = vsel %vm832, %v831, %v826
    %v834 = vadd.s32 %v745, 4294967232
    %v835 = vlaneseq
    %v836 = vshrl.u32 %v835, 7
    %v837 = vsub.s32 %v834, %v836
    %v838 = vrot.slane %v673, %v837
    %vm839 = vcmask 589312
    %v840 = vsel %vm839, %v838, %v833
    %v841 = vadd.s32 %v745, 4294967224
    %v842 = vlaneseq
    %v843 = vshrl.u32 %v842, 7
    %v844 = vsub.s32 %v841, %v843
    %v845 = vrot.slane %v676, %v844
    %vm846 = vcmask 654912
    %v847 = vsel %vm846, %v845, %v840
    %v848 = vadd.s32 %v745, 4294967216
    %v849 = vlaneseq
    %v850 = vshrl.u32 %v849, 7
    %v851 = vsub.s32 %v848, %v850
    %v852 = vrot.slane %v679, %v851
    %vm853 = vcmask 720512
    %v854 = vsel %vm853, %v852, %v847
    %v855 = vadd.s32 %v745, 4294967208
    %v856 = vlaneseq
    %v857 = vshrl.u32 %v856, 7
    %v858 = vsub.s32 %v855, %v857
    %v859 = vrot.slane %v682, %v858
    %vm860 = vcmask 786112
    %v861 = vsel %vm860, %v859, %v854
    %v862 = vadd.s32 %v745, 4294967200
    %v863 = vlaneseq
    %v864 = vshrl.u32 %v863, 7
    %v865 = vsub.s32 %v862, %v864
    %v866 = vrot.slane %v685, %v865
    %vm867 = vcmask 851712
    %v868 = vsel %vm867, %v866, %v861
    %v869 = vadd.s32 %v745, 4294967192
    %v870 = vlaneseq
    %v871 = vshrl.u32 %v870, 7
    %v872 = vsub.s32 %v869, %v871
    %v873 = vrot.slane %v688, %v872
    %vm874 = vcmask 917312
    %v875 = vsel %vm874, %v873, %v868
    %v876 = vadd.s32 %v745, 4294967184
    %v877 = vlaneseq
    %v878 = vshrl.u32 %v877, 7
    %v879 = vsub.s32 %v876, %v878
    %v880 = vrot.slane %v691, %v879
    %vm881 = vcmask 982912
    %v882 = vsel %vm881, %v880, %v875
    %v883 = vadd.s32 %v745, 4294967176
    %v884 = vlaneseq
    %v885 = vshrl.u32 %v884, 7
    %v886 = vsub.s32 %v883, %v885
    %v887 = vrot.slane %v694, %v886
    %vm888 = vcmask 1048512
    %v889 = vsel %vm888, %v887, %v882
    %v890 = vlaneseq
    %v891 = vshrl.u32 %v890, 7
    %v892 = vsub.s32 %v745, %v891
    %v893 = vrot.slane %v697, %v892
    %v894 = vlaneseq
    %v895 = vshrl.u32 %v894, 7
    %v896 = vsub.s32 %v785, %v895
    %v897 = vrot.slane %v700, %v896
    %v898 = vsel %vm790, %v897, %v893
    %v899 = vlaneseq
    %v900 = vshrl.u32 %v899, 7
    %v901 = vsub.s32 %v792, %v900
    %v902 = vrot.slane %v703, %v901
    %v903 = vsel %vm797, %v902, %v898
    %v904 = vlaneseq
    %v905 = vshrl.u32 %v904, 7
    %v906 = vsub.s32 %v799, %v905
    %v907 = vrot.slane %v706, %v906
    %v908 = vsel %vm804, %v907, %v903
    %v909 = vlaneseq
    %v910 = vshrl.u32 %v909, 7
    %v911 = vsub.s32 %v806, %v910
    %v912 = vrot.slane %v709, %v911
    %v913 = vsel %vm811, %v912, %v908
    %v914 = vlaneseq
    %v915 = vshrl.u32 %v914, 7
    %v916 = vsub.s32 %v813, %v915
    %v917 = vrot.slane %v712, %v916
    %v918 = vsel %vm818, %v917, %v913
    %v919 = vlaneseq
    %v920 = vshrl.u32 %v919, 7
    %v921 = vsub.s32 %v820, %v920
    %v922 = vrot.slane %v715, %v921
    %v923 = vsel %vm825, %v922, %v918
    %v924 = vlaneseq
    %v925 = vshrl.u32 %v924, 7
    %v926 = vsub.s32 %v827, %v925
    %v927 = vrot.slane %v718, %v926
    %v928 = vsel %vm832, %v927, %v923
    %v929 = vlaneseq
    %v930 = vshrl.u32 %v929, 7
    %v931 = vsub.s32 %v834, %v930
    %v932 = vrot.slane %v721, %v931
    %v933 = vsel %vm839, %v932, %v928
    %v934 = vlaneseq
    %v935 = vshrl.u32 %v934, 7
    %v936 = vsub.s32 %v841, %v935
    %v937 = vrot.slane %v724, %v936
    %v938 = vsel %vm846, %v937, %v933
    %v939 = vlaneseq
    %v940 = vshrl.u32 %v939, 7
    %v941 = vsub.s32 %v848, %v940
    %v942 = vrot.slane %v727, %v941
    %v943 = vsel %vm853, %v942, %v938
    %v944 = vlaneseq
    %v945 = vshrl.u32 %v944, 7
    %v946 = vsub.s32 %v855, %v945
    %v947 = vrot.slane %v730, %v946
    %v948 = vsel %vm860, %v947, %v943
    %v949 = vlaneseq
    %v950 = vshrl.u32 %v949, 7
    %v951 = vsub.s32 %v862, %v950
    %v952 = vrot.slane %v733, %v951
    %v953 = vsel %vm867, %v952, %v948
    %v954 = vlaneseq
    %v955 = vshrl.u32 %v954, 7
    %v956 = vsub.s32 %v869, %v955
    %v957 = vrot.slane %v736, %v956
    %v958 = vsel %vm874, %v957, %v953
    %v959 = vlaneseq
    %v960 = vshrl.u32 %v959, 7
    %v961 = vsub.s32 %v876, %v960
    %v962 = vrot.slane %v739, %v961
    %v963 = vsel %vm881, %v962, %v958
    %v964 = vlaneseq
    %v965 = vshrl.u32 %v964, 7
    %v966 = vsub.s32 %v883, %v965
    %v967 = vrot.slane %v742, %v966
    %v968 = vsel %vm888, %v967, %v963
    %vm969 = vcmask 1041409
    %v970 = vsel %vm969, %v968, %v889
    %v972 = vsel %vm748, %v970, -1e+30
    %s973 = sshra.s32 %s743, 7
    %s974 = sand.u32 %s743, 127
    %s975 = scalar_lea.vmem [#allocation3], %s973
    %976 = vst [vmem:[%s975] sm:$0x3] %v972
    %p977 = scmp.eq.s32.totalorder 0, 0
    // Predicated region
    $region64: #{tpu_custom_call.1} parent=1 // pred_check
      %p978 = pneg %p977
    $region65: #{tpu_custom_call.1} parent=1 // pred_check_branch
      %980 = sbr.rel (%p978) target = $region67
    $region66: #{tpu_custom_call.1} parent=1 // pred_region
      %v981 = vld [vmem:[#allocation3] sm:$0x3]
      %vm982 = vcmask 1041408
      %v983 = vsel %vm982, %v981, -inf
      %984 = vmax.xlane.f32.xlu0 %v983
      %v985 = vpop.xlane.xlu0 %984
      %v986 = vsub.f32 %v981, %v985
      %v987 = vmul.f32 %v986, 1.442695
      %v988 = vpow.pop %v987
      %v989 = vsel %vm982, %v988, 0.0
      %990 = vadd.xlane.f32.xlu0 %v989
      %v991 = vpop.xlane.xlu0 %990
      %v992 = vrcp.pop %v991
      %v993 = vmul.f32 %v988, %v992
      %994 = vst [vmem:[#allocation3] sm:$0x3] %v993
    $region67: #{tpu_custom_call.1} parent=1 // pred_fallthru
      _
    // Predicated region
    $region68: #{tpu_custom_call.1} parent=1 // pred_check
      _
    $region69: #{tpu_custom_call.1} parent=1 // pred_check_branch
      %996 = sbr.rel (0) target = $region71
    $region70: #{tpu_custom_call.1} parent=1 // pred_region
      %s998 = ssub.s32 32, 32
      %999 = vsyncadd [#allocation4], %s998
      %s1001 = sshll.u32 [#allocation3], 4
      %s1002 = int_to_ptr.vmem [resolvable:$true] %s1001
      %1004 = dma.vmem_to_hbm [thread:$0]  %s1002, 32, %s6, [#allocation4]
    $region71: #{tpu_custom_call.1} parent=1 // pred_fallthru
      _
    // Predicated region
    $region72: #{tpu_custom_call.1} parent=1 // pred_check
      _
    $region73: #{tpu_custom_call.1} parent=1 // pred_check_branch
      %1006 = sbr.rel (0) target = $region75
    $region74: #{tpu_custom_call.1} parent=1 // pred_region
      %1007 = dma.done [#allocation4], 32
    $region75: #{tpu_custom_call.1} parent=1 // pred_fallthru
      _
    %1008 = vsyncpa [#allocation4], 1

</llo_original>
